<compile_context>
chip_gen: v7x
topology: tpu7x:2x2x1
jax: 0.10.0
libtpu: 0.0.40
codegen_flags: <defaults>
</compile_context>

<pallas_src>
import functools

import jax
import jax.numpy as jnp
from jax.experimental import pallas as pl
from jax.experimental.pallas import tpu as pltpu


def _adapt_kernel(x_ref, w_ref, b_ref, o_ref):
    # x_ref: (TM, Ds) f32/bf16, w_ref: (Ds, TN) bf16, b_ref: (1, TN) f32,
    # o_ref: (TM, TN) bf16.
    x = x_ref[...]
    if x.dtype != jnp.bfloat16:          # fused hidden_state.to(bf16)
        x = x.astype(jnp.bfloat16)
    acc = jnp.dot(x, w_ref[...], preferred_element_type=jnp.float32)   # MXU
    o_ref[...] = (acc + b_ref[...]).astype(o_ref.dtype)


def _vmem_capacity_bytes():
    """Physical VMEM per TensorCore; conservative 64 MiB (v7x) fallback."""
    try:
        cap = getattr(pltpu.get_tpu_info(), "vmem_capacity_bytes", None)
        if cap:
            return int(cap)
    except Exception:
        pass
    return 64 << 20


def _choose_tiles(M, Ds, Dt, x_bytes, vmem_usable, tm_pref):
    """Pick (TM, TN) so the double-buffered working set fits vmem_usable."""
    tm_pref = max(8, (tm_pref // 8) * 8)
    TM = M if M <= tm_pref else tm_pref        # full-extent or a multiple of 8

    def footprint(tm, tn):
        return (2 * tm * Ds * x_bytes          # x tiles (double-buffered)
                + 2 * tm * Ds * 2              # in-kernel bf16 cast copy
                + 2 * Ds * tn * 2              # weight tile (double-buffered)
                + 2 * tn * 4                   # f32 bias tile
                + 2 * tm * tn * 2              # out tiles (double-buffered)
                + 2 * tm * tn * 4              # f32 matmul accumulator
                + (2 << 20))                   # compiler scratch headroom

    # Prefer full Dt (weight resident across all token tiles of a layer);
    # otherwise lane-dense (multiple-of-128) teacher-dim tiles.
    tn_candidates = [Dt] + [t for t in (2048, 1024, 512, 256, 128) if t < Dt]
    for tn in tn_candidates:
        if footprint(TM, tn) <= vmem_usable:
            return TM, tn, footprint(TM, tn)
    # Last resort: shrink the token tile (kept a multiple of 8).
    tn = tn_candidates[-1]
    tm = TM
    while tm > 8 and tm % 8 == 0:
        tm = max(8, (tm // 2) // 8 * 8)
        if footprint(tm, tn) <= vmem_usable:
            return tm, tn, footprint(tm, tn)
        if tm == 8:
            break
    return TM, tn, footprint(TM, tn)


@functools.partial(jax.jit, static_argnames=("tm",))
def multi_layer_adaptation(hidden_stack, w_stack, b_stack, *, tm=512):
    """hidden_stack: [L, M, D_s] f32 (or bf16, cast then skipped);
    w_stack: [L, D_s, D_t] bf16; b_stack: [L, 1, D_t] bf16.
    Returns [L, M, D_t] bf16."""
    L, M, Ds = hidden_stack.shape
    Dt = w_stack.shape[-1]
    x_bytes = jnp.dtype(hidden_stack.dtype).itemsize

    vmem_cap = _vmem_capacity_bytes()
    vmem_usable = max(32 << 20, vmem_cap - (12 << 20))  # ~52 MiB v7x, ~116 MiB v5e/v6e
    TM, TN, fp = _choose_tiles(M, Ds, Dt, x_bytes, vmem_usable, tm)

    n_tiles = pl.cdiv(Dt, TN)
    m_tiles = pl.cdiv(M, TM)

    # Hoist the bias cast out of the kernel hot loop (tiny: L x D_t values).
    b_f32 = b_stack.astype(jnp.float32)

    vmem_limit = int(min(max(32 << 20, fp + (fp >> 2)), vmem_usable))

    # Megacore: split on the layer axis when possible so each core works on a
    # disjoint weight set (no duplicated weight DMA into both VMEMs).
    if L >= 2:
        dims = ("parallel", "arbitrary", "arbitrary")
    else:
        dims = ("parallel", "parallel", "arbitrary")

    cost = pl.CostEstimate(
        flops=2 * L * M * Ds * Dt,
        bytes_accessed=(L * n_tiles * M * Ds * x_bytes   # x (re-read per Dt tile)
                        + L * Ds * Dt * 2                # weights
                        + L * Dt * 4                     # bias
                        + L * M * Dt * 2),               # output
        transcendentals=0,
    )

    out = pl.pallas_call(
        _adapt_kernel,
        out_shape=jax.ShapeDtypeStruct((L, M, Dt), jnp.bfloat16),
        grid_spec=pltpu.PrefetchScalarGridSpec(
            num_scalar_prefetch=0,
            grid=(L, n_tiles, m_tiles),
            in_specs=[
                # Leading layer dim squeezed (None) -> 2-D refs in the kernel.
                pl.BlockSpec((None, TM, Ds), lambda l, n, m: (l, m, 0)),
                # Weight / bias block indices constant over the innermost m
                # axis -> the tile stays VMEM-resident across token tiles.
                pl.BlockSpec((None, Ds, TN), lambda l, n, m: (l, 0, n)),
                pl.BlockSpec((None, 1, TN), lambda l, n, m: (l, 0, n)),
            ],
            out_specs=pl.BlockSpec((None, TM, TN), lambda l, n, m: (l, m, n)),
        ),
        compiler_params=pltpu.CompilerParams(
            dimension_semantics=dims,
            vmem_limit_bytes=vmem_limit,
        ),
        cost_estimate=cost,
    )(hidden_stack, w_stack, b_f32)

    return out


def create_layer_mapping(num_student_layers, num_teacher_layers):
    # Built in __init__ of the PyTorch module but never used in forward().
    return {i: round(i * (num_teacher_layers - 1) / (num_student_layers - 1))
            for i in range(num_student_layers)}


def init_params(key, num_student_layers, student_dim, teacher_dim):
    """PyTorch nn.Linear-style init: U(-1/sqrt(fan_in), 1/sqrt(fan_in)), bf16."""
    bound = 1.0 / (student_dim ** 0.5)
    kw, kb = jax.random.split(key)
    # PyTorch Linear weight is [teacher_dim, student_dim]; we store the
    # transpose [student_dim, teacher_dim] so the kernel matmul is x @ W.
    w = jax.random.uniform(kw, (num_student_layers, student_dim, teacher_dim),
                           minval=-bound, maxval=bound, dtype=jnp.float32)
    b = jax.random.uniform(kb, (num_student_layers, 1, teacher_dim),
                           minval=-bound, maxval=bound, dtype=jnp.float32)
    return w.astype(jnp.bfloat16), b.astype(jnp.bfloat16)


if __name__ == "__main__":
    # Small, module-consistent shapes.
    # NOTE: production teacher dims (>=2048) are lane-dense (multiple of 128);
    # the toy Dt=64 is handled as a full-extent block and just underfills the
    # MXU, which is fine for this correctness-scale run.
    batch, seq = 2, 8
    student_dim, teacher_dim = 32, 64
    num_student_layers, num_teacher_layers = 4, 12

    key = jax.random.PRNGKey(0)
    k_params, k_hidden = jax.random.split(key)

    w_stack, b_stack = init_params(k_params, num_student_layers,
                                   student_dim, teacher_dim)
    # TODO(synk): layer_mapping is produced in __init__ but never consumed by
    # forward(); kept only for module fidelity.
    layer_mapping = create_layer_mapping(num_student_layers, num_teacher_layers)

    # Student hidden states: list of [batch, seq, student_dim] f32 (the bf16
    # cast happens inside the kernel, matching hidden_state.to(self.dtype)).
    hidden_keys = jax.random.split(k_hidden, num_student_layers)
    student_hidden_states = [
        jax.random.normal(hk, (batch, seq, student_dim), dtype=jnp.float32)
        for hk in hidden_keys
    ]

    # Glue: stack and flatten tokens -> [L, B*S, D_s], kept in f32.
    hidden_stack = jnp.stack(
        [h.reshape(batch * seq, student_dim) for h in student_hidden_states])

    out_stack = jax.block_until_ready(
        multi_layer_adaptation(hidden_stack, w_stack, b_stack))

    # Back to the list-of-layers output shape: [batch, seq, teacher_dim] each.
    adapted_hidden_states = [
        out_stack[i].reshape(batch, seq, teacher_dim)
        for i in range(num_student_layers)
    ]

    def ref_layer(h2d, w, b):
        return (h2d.astype(jnp.bfloat16).astype(jnp.float32)
                @ w.astype(jnp.float32)
                + b.astype(jnp.float32)).astype(jnp.bfloat16)

    # Sanity check against a pure-JAX reference.
    for i, h in enumerate(student_hidden_states):
        ref = ref_layer(h.reshape(batch * seq, student_dim), w_stack[i], b_stack[i])
        got = adapted_hidden_states[i].reshape(batch * seq, teacher_dim)
        assert jnp.allclose(got.astype(jnp.float32), ref.astype(jnp.float32),
                            atol=2e-2, rtol=2e-2), f"mismatch at layer {i}"

    # Ragged-M path (no pad / slice anymore): M=20 with tm=8 gives 3 token
    # tiles and a masked partial last tile.
    m_ragged = 20
    hidden_ragged = jax.random.normal(
        jax.random.PRNGKey(1),
        (num_student_layers, m_ragged, student_dim), dtype=jnp.float32)
    out_ragged = jax.block_until_ready(
        multi_layer_adaptation(hidden_ragged, w_stack, b_stack, tm=8))
    for i in range(num_student_layers):
        ref = ref_layer(hidden_ragged[i], w_stack[i], b_stack[i])
        assert jnp.allclose(out_ragged[i].astype(jnp.float32),
                            ref.astype(jnp.float32),
                            atol=2e-2, rtol=2e-2), f"ragged mismatch at layer {i}"

    print("KERNEL_OK")
</pallas_src>

<mosaic_0001>
module attributes {stable_mosaic.version = 11 : i64} {
  func.func @_adapt_kernel(%arg0: i32, %arg1: i32, %arg2: i32, %arg3: memref<1x16x32xf32, #tpu.memory_space<vmem>>, %arg4: memref<1x32x64xbf16, #tpu.memory_space<vmem>>, %arg5: memref<1x1x64xf32, #tpu.memory_space<vmem>>, %arg6: memref<1x16x64xbf16, #tpu.memory_space<vmem>>) attributes {dimension_semantics = [#tpu.dimension_semantics<parallel>, #tpu.dimension_semantics<arbitrary>, #tpu.dimension_semantics<arbitrary>], iteration_bounds = array<i64: 4, 1, 1>, scalar_prefetch = 0 : i64, scratch_operands = 0 : i64, tpu.core_type = #tpu.core_type<tc>, window_params = [{transform_indices = @transform_0, window_bounds = array<i64: 1, 16, 32>}, {transform_indices = @transform_1, window_bounds = array<i64: 1, 32, 64>}, {transform_indices = @transform_2, window_bounds = array<i64: 1, 1, 64>}, {transform_indices = @transform_3, window_bounds = array<i64: 1, 16, 64>}]} {
    %c0 = arith.constant 0 : index
    %c0_0 = arith.constant 0 : index
    %c0_1 = arith.constant 0 : index
    %0 = vector.load %arg3[%c0, %c0_0, %c0_1] : memref<1x16x32xf32, #tpu.memory_space<vmem>>, vector<1x16x32xf32>
    %1 = vector.shape_cast %0 : vector<1x16x32xf32> to vector<16x32xf32>
    %2 = arith.truncf %1 : vector<16x32xf32> to vector<16x32xbf16>
    %c0_2 = arith.constant 0 : index
    %c0_3 = arith.constant 0 : index
    %c0_4 = arith.constant 0 : index
    %3 = vector.load %arg4[%c0_2, %c0_3, %c0_4] : memref<1x32x64xbf16, #tpu.memory_space<vmem>>, vector<1x32x64xbf16>
    %4 = vector.shape_cast %3 : vector<1x32x64xbf16> to vector<32x64xbf16>
    %cst = arith.constant dense<0.000000e+00> : vector<16x64xf32>
    %5 = tpu.matmul %2, %4, %cst {dimension_numbers = #tpu.dot_dimension_numbers<[1], [0], [0], [1], [0, 0, 1, 1], [], []>} : vector<16x32xbf16>, vector<32x64xbf16>, vector<16x64xf32> -> vector<16x64xf32>
    %c0_5 = arith.constant 0 : index
    %c0_6 = arith.constant 0 : index
    %c0_7 = arith.constant 0 : index
    %6 = vector.load %arg5[%c0_5, %c0_6, %c0_7] : memref<1x1x64xf32, #tpu.memory_space<vmem>>, vector<1x1x64xf32>
    %7 = vector.shape_cast %6 : vector<1x1x64xf32> to vector<1x64xf32>
    %8 = vector.broadcast %7 : vector<1x64xf32> to vector<16x64xf32>
    %9 = arith.addf %5, %8 : vector<16x64xf32>
    %10 = arith.truncf %9 : vector<16x64xf32> to vector<16x64xbf16>
    %c0_8 = arith.constant 0 : index
    %c0_9 = arith.constant 0 : index
    %c0_10 = arith.constant 0 : index
    %11 = vector.load %arg6[%c0_8, %c0_9, %c0_10] : memref<1x16x64xbf16, #tpu.memory_space<vmem>>, vector<1x16x64xbf16>
    %12 = vector.shape_cast %11 : vector<1x16x64xbf16> to vector<16x64xbf16>
    %13 = vector.shape_cast %10 : vector<16x64xbf16> to vector<1x16x64xbf16>
    tpu.vector_store %arg6[%c0_8, %c0_9, %c0_10], %13 {strides = array<i32>} : memref<1x16x64xbf16, #tpu.memory_space<vmem>>, vector<1x16x64xbf16>,
    return
  }
  func.func @transform_0(%arg0: i32, %arg1: i32, %arg2: i32) -> (i32, i32, i32) {
    %c0_i32 = arith.constant 0 : i32
    %c0_i32_0 = arith.constant 0 : i32
    return %arg0, %arg2, %c0_i32 : i32, i32, i32
  }
  func.func @transform_1(%arg0: i32, %arg1: i32, %arg2: i32) -> (i32, i32, i32) {
    %c0_i32 = arith.constant 0 : i32
    %c0_i32_0 = arith.constant 0 : i32
    return %arg0, %c0_i32, %arg1 : i32, i32, i32
  }
  func.func @transform_2(%arg0: i32, %arg1: i32, %arg2: i32) -> (i32, i32, i32) {
    %c0_i32 = arith.constant 0 : i32
    %c0_i32_0 = arith.constant 0 : i32
    return %arg0, %c0_i32, %arg1 : i32, i32, i32
  }
  func.func @transform_3(%arg0: i32, %arg1: i32, %arg2: i32) -> (i32, i32, i32) {
    %c0_i32 = arith.constant 0 : i32
    return %arg0, %arg2, %arg1 : i32, i32, i32
  }
}

</mosaic_0001>

<llo_original>
// kernel: multi_layer_adaptation.1
$region0: #{multi_layer_adaptation.1}
  #allocation0 [shape = 'u32[]', space=smem, size = 0x4, offset = 0x4, fixed_abs, tag = 'smem constant byte address 0x4 - core index']
  #allocation1 [shape = 'u32[144,128]{1,0:T(1,128)}', space=vmem, size = 0x12000, scoped, tag = 'internal scratch']
  %s0 = inlined_call_operand.hbm [shape: f32[4,16,32], index: 0, kind: input, shape index: {}]
  %s1 = inlined_call_operand.hbm [shape: bf16[4,32,64], index: 1, kind: input, shape index: {}]
  %s2 = inlined_call_operand.vmem [shape: f32[4,1,64], index: 2, kind: input, shape index: {}]
  %s3 = inlined_call_operand.hbm [shape: bf16[4,16,64], index: 3, kind: output, shape index: {}]
  %s4 = sld [smem:[#allocation0]]
  $region53: #{multi_layer_adaptation.1} parent=0
    _
  %s6 = ssub.s32 1, %s4
  %s7 = scalar_select 0, %s6, %s4
  $region1: #{multi_layer_adaptation.1} parent=0
    #allocation2 [shape = 'u8[16384]{0}', space=vmem, size = 0x4000, scoped, tag = 'input window, operand 0']
    #allocation3 [shape = 's32[2]{0}', space=sflag, size = 0x8, scoped, tag = 'scoped memory for multi_layer_adaptation.1']
    #allocation4 [shape = 's32[2]{0}', space=sflag, size = 0x8, scoped, tag = 'scoped memory for multi_layer_adaptation.1']
    #allocation5 [shape = 'u8[16384]{0}', space=vmem, size = 0x4000, scoped, tag = 'input window, operand 1']
    #allocation6 [shape = 's32[2]{0}', space=sflag, size = 0x8, scoped, tag = 'scoped memory for multi_layer_adaptation.1']
    #allocation7 [shape = 'u8[8192]{0}', space=vmem, size = 0x2000, scoped, tag = 'output window, operand 0']
    %8 = vsyncpa [#allocation3], 0
    %s9 = scalar_lea.sflag [#allocation3], 1
    %10 = vsyncpa %s9, 0
    %11 = vsyncpa [#allocation6], 0
    %s12 = scalar_lea.sflag [#allocation6], 1
    %13 = vsyncpa %s12, 0
    %14 = vsyncpa [#allocation4], 0
    %s15 = scalar_lea.sflag [#allocation4], 1
    %16 = vsyncpa %s15, 0
    loop: start=0, step=1, limit=6
    $region2: #{multi_layer_adaptation.1} parent=1 // loop_pre_header
      _
    $region3: #{multi_layer_adaptation.1} parent=1 // loop_header
      %s18 = sphi 0, %s22
      %p19 = scmp.ge.s32.totalorder %s18, 6
      %s25 = sphi 0, %s44
      %s26 = sphi 0, %s40
      %s27 = sphi 0, %s36
      %s28 = sphi 0, %s25
      %s29 = sphi 0, %s26
      %s30 = sphi 0, %s27
      %s31 = sphi 0, %s28
      %s32 = sphi 0, %s29
      %s33 = sphi 0, %s30
      %s49 = sphi 0, %s51
      %s52 = sphi 0, %s49
      %s53 = sphi 0, %s52
      %s69 = sphi 0, %s53
      %s77 = sphi 0, %s79
      %s80 = sphi 0, %s77
      %s81 = sphi 0, %s80
      %s97 = sphi 0, %s81
      %s105 = sphi 0, %s107
      %s108 = sphi 0, %s105
      %s109 = sphi 0, %s108
      %s125 = sphi 0, %s109
      %s135 = sphi 0, %s137
      %s138 = sphi 0, %s135
      %s139 = sphi 0, %s138
      %s155 = sphi 0, %s139
    $region4: #{multi_layer_adaptation.1} parent=1 // loop_header_branch
      %21 = sbr.rel (%p19) target = $region8
    $region5: #{multi_layer_adaptation.1} parent=1 // loop_body
      %s23 = ssub.s32 %s18, 1
      %s24 = ssub.s32 %s18, 2
      %s34 = sadd.s32 1, %s27
      %p35 = scmp.ge.s32.totalorder %s34, 1
      %s36 = scalar_select %p35, 0, %s34
      %s37 = sadd.s32 1, %s26
      %s38 = scalar_select %p35, %s37, %s26
      %p39 = scmp.ge.s32.totalorder %s38, 1
      %s40 = scalar_select %p39, 0, %s38
      %s41 = sadd.s32 1, %s25
      %s42 = scalar_select %p39, %s41, %s25
      %p43 = scmp.ge.s32.totalorder %s42, 4
      %s44 = scalar_select %p43, 0, %s42
      %s45 = ssub.s32 %s25, %s44
      %s46 = ssub.s32 %s27, %s36
      %s47 = sor.u32 %s45, %s46
      %p48 = scmp.eq.s32.totalorder %s47, 0
      %s50 = sadd.s32 %s49, 1
      %s51 = scalar_select %p48, %s49, %s50
      %p54 = pneg %p48
      %p55 = scmp.eq.s32.totalorder %s18, 3
      %p56 = por %p54, %p55
      %p57 = scmp.ne.s32.totalorder %s49, %s52
      %p58 = scmp.eq.s32.totalorder %s18, 0
      %p59 = por %p57, %p58
      %p60 = scmp.ne.s32.totalorder %s49, %s52
      %p61 = scmp.eq.s32.totalorder %s23, 3
      %p62 = por %p60, %p61
      %p63 = scmp.ne.s32.totalorder %s52, %s53
      %p64 = scmp.eq.s32.totalorder %s23, 0
      %p65 = por %p63, %p64
      %p66 = scmp.ne.s32.totalorder %s52, %s53
      %p67 = scmp.eq.s32.totalorder %s24, 3
      %p68 = por %p66, %p67
      %p70 = scmp.ne.s32.totalorder %s53, %s69
      %p71 = scmp.eq.s32.totalorder %s24, 0
      %p72 = por %p70, %p71
      %s73 = ssub.s32 %s25, %s44
      %s74 = ssub.s32 %s26, %s40
      %s75 = sor.u32 %s73, %s74
      %p76 = scmp.eq.s32.totalorder %s75, 0
      %s78 = sadd.s32 %s77, 1
      %s79 = scalar_select %p76, %s77, %s78
      %p82 = pneg %p76
      %p83 = scmp.eq.s32.totalorder %s18, 3
      %p84 = por %p82, %p83
      %p85 = scmp.ne.s32.totalorder %s77, %s80
      %p86 = scmp.eq.s32.totalorder %s18, 0
      %p87 = por %p85, %p86
      %p88 = scmp.ne.s32.totalorder %s77, %s80
      %p89 = scmp.eq.s32.totalorder %s23, 3
      %p90 = por %p88, %p89
      %p91 = scmp.ne.s32.totalorder %s80, %s81
      %p92 = scmp.eq.s32.totalorder %s23, 0
      %p93 = por %p91, %p92
      %p94 = scmp.ne.s32.totalorder %s80, %s81
      %p95 = scmp.eq.s32.totalorder %s24, 3
      %p96 = por %p94, %p95
      %p98 = scmp.ne.s32.totalorder %s81, %s97
      %p99 = scmp.eq.s32.totalorder %s24, 0
      %p100 = por %p98, %p99
      %s101 = ssub.s32 %s25, %s44
      %s102 = ssub.s32 %s26, %s40
      %s103 = sor.u32 %s101, %s102
      %p104 = scmp.eq.s32.totalorder %s103, 0
      %s106 = sadd.s32 %s105, 1
      %s107 = scalar_select %p104, %s105, %s106
      %p110 = pneg %p104
      %p111 = scmp.eq.s32.totalorder %s18, 3
      %p112 = por %p110, %p111
      %p113 = scmp.ne.s32.totalorder %s105, %s108
      %p114 = scmp.eq.s32.totalorder %s18, 0
      %p115 = por %p113, %p114
      %p116 = scmp.ne.s32.totalorder %s105, %s108
      %p117 = scmp.eq.s32.totalorder %s23, 3
      %p118 = por %p116, %p117
      %p119 = scmp.ne.s32.totalorder %s108, %s109
      %p120 = scmp.eq.s32.totalorder %s23, 0
      %p121 = por %p119, %p120
      %p122 = scmp.ne.s32.totalorder %s108, %s109
      %p123 = scmp.eq.s32.totalorder %s24, 3
      %p124 = por %p122, %p123
      %p126 = scmp.ne.s32.totalorder %s109, %s125
      %p127 = scmp.eq.s32.totalorder %s24, 0
      %p128 = por %p126, %p127
      %s129 = ssub.s32 %s25, %s44
      %s130 = ssub.s32 %s27, %s36
      %s131 = sor.u32 %s129, %s130
      %s132 = ssub.s32 %s26, %s40
      %s133 = sor.u32 %s131, %s132
      %p134 = scmp.eq.s32.totalorder %s133, 0
      %s136 = sadd.s32 %s135, 1
      %s137 = scalar_select %p134, %s135, %s136
      %p140 = pneg %p134
      %p141 = scmp.eq.s32.totalorder %s18, 3
      %p142 = por %p140, %p141
      %p143 = scmp.ne.s32.totalorder %s135, %s138
      %p144 = scmp.eq.s32.totalorder %s18, 0
      %p145 = por %p143, %p144
      %p146 = scmp.ne.s32.totalorder %s135, %s138
      %p147 = scmp.eq.s32.totalorder %s23, 3
      %p148 = por %p146, %p147
      %p149 = scmp.ne.s32.totalorder %s138, %s139
      %p150 = scmp.eq.s32.totalorder %s23, 0
      %p151 = por %p149, %p150
      %p152 = scmp.ne.s32.totalorder %s138, %s139
      %p153 = scmp.eq.s32.totalorder %s24, 3
      %p154 = por %p152, %p153
      %p156 = scmp.ne.s32.totalorder %s139, %s155
      %p157 = scmp.eq.s32.totalorder %s24, 0
      %p158 = por %p156, %p157
      %p159 = scmp.le.s32.totalorder 1, %s18
      %p160 = scmp.lt.s32.totalorder %s18, 5
      %p161 = pnand %p159, %p160
      %p162 = pneg %p161
      // Predicated region
      $region9: #{multi_layer_adaptation.1} parent=5 // pred_check
        _
      $region10: #{multi_layer_adaptation.1} parent=5 // pred_check_branch
        %164 = sbr.rel (%p161) target = $region12
      $region11: #{multi_layer_adaptation.1} parent=5 // pred_region
        %s165 = ssub.s32 %s18, 1
      $region12: #{multi_layer_adaptation.1} parent=5 // pred_fallthru
        _
      %p166 = scmp.lt.s32.totalorder %s18, 4
      // Predicated region
      $region13: #{multi_layer_adaptation.1} parent=5 // pred_check
        %p167 = pneg %p166
      $region14: #{multi_layer_adaptation.1} parent=5 // pred_check_branch
        %169 = sbr.rel (%p167) target = $region16
      $region15: #{multi_layer_adaptation.1} parent=5 // pred_region
        // Predicated region
        $region17: #{multi_layer_adaptation.1} parent=15 // pred_check
          %p170 = pneg %p59
        $region18: #{multi_layer_adaptation.1} parent=15 // pred_check_branch
          %172 = sbr.rel (%p170) target = $region20
        $region19: #{multi_layer_adaptation.1} parent=15 // pred_region
          %s173 = sand.u32 %s49, 1
          %s174 = scalar_lea.sflag [#allocation3], %s173
          %s175 = sand.u32 %s49, 1
          %s176 = smul.addr %s175, 16
          %s177 = scalar_lea.vmem [#allocation2], %s176
          %s178 = smul.u32 2, %s27
          %s180 = ssub.s32 256, 256
          %181 = vsyncadd %s174, %s180
          %s182 = smul.addr %s25, 2
          %s183 = sadd.s32 %s178, %s182
          %s184 = smul.addr %s183, 128
          %s185 = scalar_lea.hbm %s0, %s184
          %s186 = sshll.u32 %s177, 4
          %s187 = int_to_ptr.vmem [resolvable:$true] %s186
          %192 = dma.hbm_to_vmem [thread:$0]  %s185, 256, %s187, %s174, 128, 128, 8
        $region20: #{multi_layer_adaptation.1} parent=15 // pred_fallthru
          _
        // Predicated region
        $region21: #{multi_layer_adaptation.1} parent=15 // pred_check
          %p193 = pneg %p87
        $region22: #{multi_layer_adaptation.1} parent=15 // pred_check_branch
          %195 = sbr.rel (%p193) target = $region24
        $region23: #{multi_layer_adaptation.1} parent=15 // pred_region
          %s196 = sand.u32 %s77, 1
          %s197 = scalar_lea.sflag [#allocation6], %s196
          %s198 = sand.u32 %s77, 1
          %s199 = smul.addr %s198, 16
          %s200 = scalar_lea.vmem [#allocation5], %s199
          %s202 = ssub.s32 256, 256
          %203 = vsyncadd %s197, %s202
          %s204 = smul.addr %s25, 4
          %s205 = sadd.s32 %s26, %s204
          %s206 = smul.addr %s205, 64
          %s207 = scalar_lea.hbm %s1, %s206
          %s208 = sshll.u32 %s200, 4
          %s209 = int_to_ptr.vmem [resolvable:$true] %s208
          %214 = dma.hbm_to_vmem [thread:$0]  %s207, 256, %s209, %s197, 64, 64, 4
        $region24: #{multi_layer_adaptation.1} parent=15 // pred_fallthru
          _
        // Predicated region
        $region25: #{multi_layer_adaptation.1} parent=15 // pred_check
          %p215 = pneg %p115
        $region26: #{multi_layer_adaptation.1} parent=15 // pred_check_branch
          %217 = sbr.rel (%p215) target = $region28
        $region27: #{multi_layer_adaptation.1} parent=15 // pred_region
          %p218 = scmp.lt.s32.totalorder %s25, 3
          %s219 = scalar_select %p218, %s25, 3
          %p220 = scmp.lt.s32.totalorder %s26, 0
          %s221 = scalar_select %p220, %s26, 0
          %s222 = sadd.s32 %s221, %s219
          %s223 = scalar_lea.vmem %s2, %s222
        $region28: #{multi_layer_adaptation.1} parent=15 // pred_fallthru
          _
      $region16: #{multi_layer_adaptation.1} parent=5 // pred_fallthru
        _
      %p224 = scmp.le.s32.totalorder 1, %s18
      %p225 = scmp.lt.s32.totalorder %s18, 5
      %p226 = pnand %p224, %p225
      %p227 = pneg %p226
      // Predicated region
      $region29: #{multi_layer_adaptation.1} parent=5 // pred_check
        _
      $region30: #{multi_layer_adaptation.1} parent=5 // pred_check_branch
        %229 = sbr.rel (%p226) target = $region32
      $region31: #{multi_layer_adaptation.1} parent=5 // pred_region
        %s230 = ssub.s32 %s18, 1
        %s231 = sand.u32 %s52, 1
        %s232 = scalar_lea.sflag [#allocation3], %s231
        %s233 = sand.u32 %s52, 1
        %s234 = smul.addr %s233, 16
        %s235 = scalar_lea.vmem [#allocation2], %s234
        // Predicated region
        $region33: #{multi_layer_adaptation.1} parent=31 // pred_check
          %p236 = pneg %p65
        $region34: #{multi_layer_adaptation.1} parent=31 // pred_check_branch
          %238 = sbr.rel (%p236) target = $region36
        $region35: #{multi_layer_adaptation.1} parent=31 // pred_region
          %239 = dma.done %s232, 256
        $region36: #{multi_layer_adaptation.1} parent=31 // pred_fallthru
          _
        %s240 = sand.u32 %s80, 1
        %s241 = scalar_lea.sflag [#allocation6], %s240
        %s242 = sand.u32 %s80, 1
        %s243 = smul.addr %s242, 16
        %s244 = scalar_lea.vmem [#allocation5], %s243
        // Predicated region
        $region37: #{multi_layer_adaptation.1} parent=31 // pred_check
          %p245 = pneg %p93
        $region38: #{multi_layer_adaptation.1} parent=31 // pred_check_branch
          %247 = sbr.rel (%p245) target = $region40
        $region39: #{multi_layer_adaptation.1} parent=31 // pred_region
          %248 = dma.done %s241, 256
        $region40: #{multi_layer_adaptation.1} parent=31 // pred_fallthru
          _
        %s249 = sand.u32 %s52, 1
        %s250 = scalar_lea.sflag [#allocation3], %s249
        %s251 = sand.u32 %s52, 1
        %s252 = smul.addr %s251, 16
        %s253 = scalar_lea.vmem [#allocation2], %s252
        %p254 = pneg %p65
        %p255 = pneg %p62
        %s256 = sand.u32 %s80, 1
        %s257 = scalar_lea.sflag [#allocation6], %s256
        %s258 = sand.u32 %s80, 1
        %s259 = smul.addr %s258, 16
        %s260 = scalar_lea.vmem [#allocation5], %s259
        %p261 = pneg %p93
        %p262 = pneg %p90
        %p263 = scmp.lt.s32.totalorder %s28, 3
        %s264 = scalar_select %p263, %s28, 3
        %p265 = scmp.lt.s32.totalorder %s29, 0
        %s266 = scalar_select %p265, %s29, 0
        %s267 = sadd.s32 %s266, %s264
        %s268 = scalar_lea.vmem %s2, %s267
        %p269 = pneg %p121
        %p270 = pneg %p118
        %p271 = pneg %p151
        %p272 = pneg %p148
        %s273 = sand.u32 %s138, 1
        %s274 = scalar_lea.sflag [#allocation4], %s273
        %s275 = sand.u32 %s138, 1
        %s276 = smul.addr %s275, 8
        %s277 = scalar_lea.vmem [#allocation7], %s276
        %s278 = smul.u32 2, %s30
        %p279 = scmp.lt.s32.totalorder %s28, 3
        %s280 = scalar_select %p279, %s28, 3
        %p281 = scmp.lt.s32.totalorder %s29, 0
        %s282 = scalar_select %p281, %s29, 0
        %s283 = sadd.s32 %s282, %s280
        %s284 = scalar_lea.vmem %s2, %s283
        %s285 = smul.u32 2, %s30
        %v287 = vld [vmem:[%s235] sm:$0xff]
        %v288 = vld [vmem:[%s235 + $0x8] sm:$0xff]
        %v289 = vpack.c.bf16 %v288, %v287
        %v290 = vld [vmem:[%s244] sm:$0xf]
        %v291 = vld [vmem:[%s244 + $0x4] sm:$0xf]
        %v292 = vld [vmem:[%s244 + $0x8] sm:$0xf]
        %v293 = vld [vmem:[%s244 + $0xc] sm:$0xf]
        %v294 = vld [vmem:[%s284] sm:$0x1]
        %v296 = vlaneseq
        %v297 = vshrl.u32 %v296, 7
        %v298 = vsub.s32 0, %v297
        %v299 = vrot.slane %v294, %v298
        %v305 = vunpack.c.l.b16 %v290
        %v306 = vunpack.c.l.b16 %v291
        %v307 = vunpack.c.l.b16 %v292
        %v308 = vunpack.c.l.b16 %v293
        %v309 = vpack.c.b16 %v306, %v305
        %v310 = vpack.c.b16 %v308, %v307
        %vm313 = vcmask 261120
        %v315 = vsel %vm313, %v289, 0
        %317 = vmatprep.subr.bf16.mxu0 0
        %318 = vmatpush1.bf16.msra.mxu0 %v309
        %319 = vmatprep.subr.bf16.mxu0 0
        %320 = vmatpush1.bf16.msra.mxu0 %v310
        %321 = vmatprep.subr.bf16.mxu0 0
        %322 = vmatpush1.bf16.msra.mxu0 0
        %323 = vmatprep.subr.bf16.mxu0 0
        %324 = vmatpush1.bf16.msra.mxu0 0
        %325 = vmatprep.subr.bf16.mxu0 0
        %326 = vmatpush1.bf16.msra.mxu0 0
        %327 = vmatprep.subr.bf16.mxu0 0
        %328 = vmatpush1.bf16.msra.mxu0 0
        %329 = vmatprep.subr.bf16.mxu0 0
        %330 = vmatpush1.bf16.msra.mxu0 0
        %331 = vmatprep.subr.bf16.mxu0 0
        %332 = vmatpush1.bf16.msra.mxu0 0
        %333 = vmatprep.subr.bf16.mxu0 0
        %334 = vmatpush1.bf16.msra.mxu0 0
        %335 = vmatprep.subr.bf16.mxu0 0
        %336 = vmatpush1.bf16.msra.mxu0 0
        %337 = vmatprep.subr.bf16.mxu0 0
        %338 = vmatpush1.bf16.msra.mxu0 0
        %339 = vmatprep.subr.bf16.mxu0 0
        %340 = vmatpush1.bf16.msra.mxu0 0
        %341 = vmatprep.subr.bf16.mxu0 0
        %342 = vmatpush1.bf16.msra.mxu0 0
        %343 = vmatprep.subr.bf16.mxu0 0
        %344 = vmatpush1.bf16.msra.mxu0 0
        %345 = vmatprep.subr.bf16.mxu0 0
        %346 = vmatpush1.bf16.msra.mxu0 0
        %347 = vmatprep.subr.bf16.mxu0 0
        %348 = vmatpush1.bf16.msra.mxu0 0
        %349 = vmatprep.mubr.bf16.mxu0 0
        %350 = vmatmul.mubr.bf16.gmra.mrb[0].mxu0 %v315
        %v351 = vpop.f32.mrb[0].mxu0
        %v352 = vadd.f32 %v299, %v351
        %v353 = vpop.f32.mrb[0].mxu0
        %v354 = vpop.f32.mrb[0].mxu0
        %v355 = vadd.f32 %v299, %v354
        %v356 = vpop.f32.mrb[0].mxu0
        %357 = vdwg.mxu0
        %v358 = vpack.c.bf16 %v355, %v352
        %v360 = vunpack.c.l.b16 %v358
        %v361 = vunpack.c.h.b16 %v358
        %v362 = vpack.c.b16 %v360, %v360
        %v363 = vpack.c.b16 %v361, %v361
        %vm366 = vcmask 519168
        %367 = vst.msk [vmem:[%s277] sm:$0xf] %vm366, %v362
        %368 = vst.msk [vmem:[%s277 + $0x4] sm:$0xf] %vm366, %v363
        %s369 = sand.u32 %s138, 1
        %s370 = scalar_lea.sflag [#allocation4], %s369
        %s371 = sand.u32 %s138, 1
        %s372 = smul.addr %s371, 8
        %s373 = scalar_lea.vmem [#allocation7], %s372
        // Predicated region
        $region41: #{multi_layer_adaptation.1} parent=31 // pred_check
          %p374 = pneg %p148
        $region42: #{multi_layer_adaptation.1} parent=31 // pred_check_branch
          %376 = sbr.rel (%p374) target = $region44
        $region43: #{multi_layer_adaptation.1} parent=31 // pred_region
          %s377 = smul.u32 2, %s30
          %s379 = ssub.s32 128, 128
          %380 = vsyncadd %s370, %s379
          %s381 = sadd.s32 %s29, %s377
          %s382 = smul.addr %s28, 2
          %s383 = sadd.s32 %s381, %s382
          %s384 = smul.addr %s383, 64
          %s385 = scalar_lea.hbm %s3, %s384
          %s386 = sshll.u32 %s373, 4
          %s387 = int_to_ptr.vmem [resolvable:$true] %s386
          %392 = dma.vmem_to_hbm [thread:$0]  %s387, 128, %s385, %s370, 64, 64, 4
        $region44: #{multi_layer_adaptation.1} parent=31 // pred_fallthru
          _
      $region32: #{multi_layer_adaptation.1} parent=5 // pred_fallthru
        _
      %p393 = scmp.le.s32.totalorder 2, %s18
      // Predicated region
      $region45: #{multi_layer_adaptation.1} parent=5 // pred_check
        %p394 = pneg %p393
      $region46: #{multi_layer_adaptation.1} parent=5 // pred_check_branch
        %396 = sbr.rel (%p394) target = $region48
      $region47: #{multi_layer_adaptation.1} parent=5 // pred_region
        %s397 = ssub.s32 %s18, 2
        // Predicated region
        $region49: #{multi_layer_adaptation.1} parent=47 // pred_check
          %p398 = pneg %p154
        $region50: #{multi_layer_adaptation.1} parent=47 // pred_check_branch
          %400 = sbr.rel (%p398) target = $region52
        $region51: #{multi_layer_adaptation.1} parent=47 // pred_region
          %s401 = sand.u32 %s139, 1
          %s402 = scalar_lea.sflag [#allocation4], %s401
          %s403 = sand.u32 %s139, 1
          %s404 = smul.addr %s403, 8
          %s405 = scalar_lea.vmem [#allocation7], %s404
          %406 = dma.done %s402, 128
        $region52: #{multi_layer_adaptation.1} parent=47 // pred_fallthru
          _
      $region48: #{multi_layer_adaptation.1} parent=5 // pred_fallthru
        _
    $region6: #{multi_layer_adaptation.1} parent=1 // loop_footer
      %s22 = sadd.s32 1, %s18
    $region7: #{multi_layer_adaptation.1} parent=1 // loop_footer_branch
      %17 = sbr.rel target = $region3
    $region8: #{multi_layer_adaptation.1} parent=1 // loop_exit
      _
    %407 = vsyncpa [#allocation3], 1
    %s408 = scalar_lea.sflag [#allocation3], 1
    %409 = vsyncpa %s408, 1
    %410 = vsyncpa [#allocation6], 1
    %s411 = scalar_lea.sflag [#allocation6], 1
    %412 = vsyncpa %s411, 1
    %413 = vsyncpa [#allocation4], 1
    %s414 = scalar_lea.sflag [#allocation4], 1
    %415 = vsyncpa %s414, 1

</llo_original>
